<compile_context>
chip_gen: v5e
topology: v5e:2x2
jax: 0.10.0
libtpu: 0.0.40
codegen_flags: <defaults>
</compile_context>

<pallas_src>
import functools

import jax
import jax.numpy as jnp
from jax.experimental import pallas as pl
from jax.experimental.pallas import tpu as pltpu


# ---------------------------------------------------------------------------
# helpers
# ---------------------------------------------------------------------------

def _physical_vmem_bytes():
    try:
        return int(pltpu.get_tpu_info().vmem_capacity_bytes)
    except Exception:
        return 64 * 1024 * 1024  # conservative (v7x per-TC VMEM)


def _gate(z, use_hard):
    if use_hard:
        return jnp.clip(z + 3.0, 0.0, 6.0) * (1.0 / 6.0)   # Hsigmoid (hard)
    return jax.nn.sigmoid(z)


# ---------------------------------------------------------------------------
# kernels
# ---------------------------------------------------------------------------

def _se_fused_kernel(x_ref, w1_ref, w2_ref, o_ref, *, inv_hw, use_hard):
    # x_ref / o_ref: (TB, C, HW) channels-first; w1_ref: (C, Cr); w2_ref: (Cr, C)
    # Squeeze: global average pool with f32 accumulation, no long-lived f32
    # copy of the whole tile.
    y = jnp.sum(x_ref[...], axis=2, dtype=jnp.float32) * inv_hw        # (TB, C)

    # Excitation: fc1 -> ReLU -> fc2 -> gate (negligible MXU work).
    h = jnp.maximum(
        jnp.dot(y, w1_ref[...], preferred_element_type=jnp.float32), 0.0)
    s = _gate(jnp.dot(h, w2_ref[...], preferred_element_type=jnp.float32),
              use_hard)                                                 # f32

    # Scale: gate kept in f32; the f32 product is downcast once.
    o_ref[...] = (x_ref[...] * s[:, :, None]).astype(o_ref.dtype)


def _se_pool_kernel(x_ref, y_ref, *, inv_hw):
    # x_ref: (1, TC, HW); y_ref: (1, TC, 1) f32 partial per-channel means.
    y_ref[...] = (
        jnp.sum(x_ref[...], axis=2, keepdims=True, dtype=jnp.float32) * inv_hw)


def _se_scale_kernel(x_ref, g_ref, o_ref):
    # x_ref / o_ref: (1, TC, HW); g_ref: (1, TC, 1) f32 gate.
    o_ref[...] = (x_ref[...] * g_ref[...]).astype(o_ref.dtype)


# ---------------------------------------------------------------------------
# tiling heuristics
# ---------------------------------------------------------------------------

def _pick_batch_tile(B, slab_bytes, w_bytes, phys):
    """Batch elements per fused grid step (generation-aware VMEM budget)."""
    budget = max(phys * 9 // 10 - 2 * w_bytes - (2 << 20), slab_bytes)
    # Block-size cap: v5e/v6e (128 MiB VMEM) amortize per-step overhead with
    # bigger blocks; v7x (64 MiB per TC) stays conservative.
    block_cap = (4 << 20) if phys <= (80 << 20) else (12 << 20)
    per_batch = 4 * slab_bytes                    # in + out, double-buffered
    tb = max(1, min(B, budget // max(per_batch, 1)))
    tb = min(tb, max(1, block_cap // max(slab_bytes, 1)))
    # Megacore (v7x has 2 TCs): keep >= 2 grid steps when half-blocks stay
    # >= ~1 MiB, and prefer an even step count so the cores stay balanced.
    half = -(-B // 2)
    if B >= 2 and half * slab_bytes >= (1 << 20):
        tb = min(tb, half)
    steps = -(-B // tb)
    if steps > 2 and steps % 2 == 1 and tb * slab_bytes >= (2 << 20):
        tb = max(1, -(-B // (steps + 1)))
    return int(tb)


def _pick_channel_tile(C, HW, itemsize, block_cap):
    """Channel tile for the split (pool + rescale) path."""
    if C <= 8 or C % 8 != 0:
        return C
    tc = max(8, (block_cap // max(HW * itemsize, 1)) // 8 * 8)
    return int(min(tc, C))


# ---------------------------------------------------------------------------
# wrappers
# ---------------------------------------------------------------------------

def _se_fused(x_flat, w1, w2, *, use_hard, phys, itemsize, slab_bytes,
              w_bytes, Cr):
    B, C, HW = x_flat.shape
    tb = _pick_batch_tile(B, slab_bytes, w_bytes, phys)
    grid = (pl.cdiv(B, tb),)

    footprint = 6 * tb * slab_bytes + 4 * w_bytes + (6 << 20)
    vmem_limit = int(min(phys * 9 // 10, max(footprint, 32 << 20)))

    cost = pl.CostEstimate(
        flops=int(4 * B * C * Cr + 2 * B * C * HW),
        transcendentals=int(B * C),
        bytes_accessed=int(2 * B * C * HW * itemsize + w_bytes),
    )

    kernel = functools.partial(_se_fused_kernel, inv_hw=1.0 / HW,
                               use_hard=use_hard)
    return pl.pallas_call(
        kernel,
        out_shape=jax.ShapeDtypeStruct(x_flat.shape, x_flat.dtype),
        grid=grid,
        in_specs=[
            pl.BlockSpec((tb, C, HW), lambda b: (b, 0, 0)),
            pl.BlockSpec((C, Cr), lambda b: (0, 0)),
            pl.BlockSpec((Cr, C), lambda b: (0, 0)),
        ],
        out_specs=pl.BlockSpec((tb, C, HW), lambda b: (b, 0, 0)),
        compiler_params=pltpu.CompilerParams(
            dimension_semantics=("parallel",),
            vmem_limit_bytes=vmem_limit,
        ),
        cost_estimate=cost,
    )(x_flat, w1, w2)


def _se_split(x_flat, w1, w2, *, use_hard, phys, itemsize):
    """Pool kernel + tiny XLA excitation + rescale kernel (huge-slab fallback)."""
    B, C, HW = x_flat.shape
    tc = _pick_channel_tile(C, HW, itemsize, block_cap=(4 << 20))
    grid = (B, pl.cdiv(C, tc))
    block_bytes = tc * HW * itemsize
    vmem_limit = int(min(phys * 9 // 10,
                         max(4 * block_bytes + (8 << 20), 32 << 20)))
    params = pltpu.CompilerParams(
        dimension_semantics=("parallel", "parallel"),
        vmem_limit_bytes=vmem_limit,
    )
    # TODO(synk): if even a (1, 8, HW) block exceeds VMEM (HW in the millions),
    # a further HW-chunked reduction pass would be needed.

    pooled = pl.pallas_call(
        functools.partial(_se_pool_kernel, inv_hw=1.0 / HW),
        out_shape=jax.ShapeDtypeStruct((B, C, 1), jnp.float32),
        grid=grid,
        in_specs=[pl.BlockSpec((1, tc, HW), lambda b, c: (b, c, 0))],
        out_specs=pl.BlockSpec((1, tc, 1), lambda b, c: (b, c, 0)),
        compiler_params=params,
        cost_estimate=pl.CostEstimate(
            flops=int(B * C * HW), transcendentals=0,
            bytes_accessed=int(B * C * HW * itemsize)),
    )(x_flat)

    # Tiny (B, C) excitation: negligible next to the HBM passes over x, so
    # plain XLA is fine here.
    y = pooled[:, :, 0]
    h = jnp.maximum(jnp.dot(y, w1.astype(jnp.float32),
                            preferred_element_type=jnp.float32), 0.0)
    g = _gate(jnp.dot(h, w2.astype(jnp.float32),
                      preferred_element_type=jnp.float32), use_hard)
    g3 = g[:, :, None].astype(jnp.float32)                          # (B, C, 1)

    return pl.pallas_call(
        _se_scale_kernel,
        out_shape=jax.ShapeDtypeStruct(x_flat.shape, x_flat.dtype),
        grid=grid,
        in_specs=[pl.BlockSpec((1, tc, HW), lambda b, c: (b, c, 0)),
                  pl.BlockSpec((1, tc, 1), lambda b, c: (b, c, 0))],
        out_specs=pl.BlockSpec((1, tc, HW), lambda b, c: (b, c, 0)),
        compiler_params=params,
        cost_estimate=pl.CostEstimate(
            flops=int(B * C * HW), transcendentals=0,
            bytes_accessed=int(2 * B * C * HW * itemsize)),
    )(x_flat, g3)


def se_module(x, w1, w2, *, use_hard=False, force_split=False):
    """SEModule forward.

    x:  (B, C, H, W)
    w1: (C, C//r)   fc1 weight, pre-transposed so kernels compute y @ w1
    w2: (C//r, C)   fc2 weight, pre-transposed
    """
    B, C, H, W = x.shape
    HW = H * W
    Cr = w1.shape[1]
    itemsize = jnp.dtype(x.dtype).itemsize

    # Channels-first contiguous view: metadata-only, no HBM relayout.
    x_flat = x.reshape(B, C, HW)
    slab_bytes = C * HW * itemsize
    w_bytes = (w1.size * jnp.dtype(w1.dtype).itemsize
               + w2.size * jnp.dtype(w2.dtype).itemsize)
    phys = _physical_vmem_bytes()

    # Split when even a TB=1 fused slab (in + out, double-buffered) blows the
    # per-TC VMEM budget (big early-layer SE, mainly an issue on v7x).
    fused_min = 4 * slab_bytes + 2 * w_bytes + (2 << 20)
    if force_split or fused_min > phys * 9 // 10:
        out_flat = _se_split(x_flat, w1, w2, use_hard=use_hard, phys=phys,
                             itemsize=itemsize)
    else:
        out_flat = _se_fused(x_flat, w1, w2, use_hard=use_hard, phys=phys,
                             itemsize=itemsize, slab_bytes=slab_bytes,
                             w_bytes=w_bytes, Cr=Cr)
    return out_flat.reshape(B, C, H, W)


def se_module_ref(x, w1, w2, *, use_hard=False):
    """Pure-JAX reference mirroring the PyTorch forward."""
    y = jnp.mean(x, axis=(2, 3))                         # (B, C)
    h = jnp.maximum(y @ w1, 0.0)                         # (B, C//r)
    s = _gate(h @ w2, use_hard)                          # (B, C)
    return x * s[:, :, None, None]


# ---------------------------------------------------------------------------
# demo / self-test
# ---------------------------------------------------------------------------

if __name__ == "__main__":
    def _check(B, C, H, W, reduction, w_scale, *, atol, rtol, force_split):
        Cr = max(1, C // reduction)
        key = jax.random.PRNGKey(0)
        kx, k1, k2 = jax.random.split(key, 3)
        x = jax.random.normal(kx, (B, C, H, W), dtype=jnp.float32)
        # nn.Linear(channel, channel//r, bias=False).weight has shape (Cr, C);
        # weights are stored pre-transposed so the kernels compute y @ w1.
        w1 = jax.random.normal(k1, (C, Cr), dtype=jnp.float32) * w_scale
        w2 = jax.random.normal(k2, (Cr, C), dtype=jnp.float32) * w_scale
        out = jax.block_until_ready(
            se_module(x, w1, w2, force_split=force_split))
        ref = se_module_ref(x, w1, w2)
        assert out.shape == ref.shape
        assert jnp.allclose(out, ref, atol=atol, rtol=rtol), (
            f"mismatch (B={B}, C={C}, HW={H * W}, split={force_split})")

    # Small shape: fused path and forced split path.
    _check(2, 8, 16, 16, 4, 0.2, atol=1e-5, rtol=1e-5, force_split=False)
    _check(2, 8, 16, 16, 4, 0.2, atol=1e-5, rtol=1e-5, force_split=True)
    # Larger SE-like shape: exercises masked (HW % 128 != 0) lane stores in the
    # fused path and channel-chunked (tc < C) blocks in the split path.
    _check(2, 2048, 28, 28, 16, 0.05, atol=5e-3, rtol=5e-3, force_split=False)
    _check(2, 2048, 28, 28, 16, 0.05, atol=5e-3, rtol=5e-3, force_split=True)

    print("KERNEL_OK")
</pallas_src>

<mosaic_0001>
module attributes {stable_mosaic.version = 11 : i64} {
  func.func @_se_fused_kernel(%arg0: i32, %arg1: memref<2x8x256xf32, #tpu.memory_space<vmem>>, %arg2: memref<8x2xf32, #tpu.memory_space<vmem>>, %arg3: memref<2x8xf32, #tpu.memory_space<vmem>>, %arg4: memref<2x8x256xf32, #tpu.memory_space<vmem>>) attributes {dimension_semantics = [#tpu.dimension_semantics<parallel>], iteration_bounds = array<i64: 1>, scalar_prefetch = 0 : i64, scratch_operands = 0 : i64, tpu.core_type = #tpu.core_type<tc>, window_params = [{transform_indices = @transform_0, window_bounds = array<i64: 2, 8, 256>}, {pipeline_mode = #tpu.pipeline_mode<synchronous>, transform_indices = @transform_1, window_bounds = array<i64: 8, 2>}, {pipeline_mode = #tpu.pipeline_mode<synchronous>, transform_indices = @transform_2, window_bounds = array<i64: 2, 8>}, {transform_indices = @transform_3, window_bounds = array<i64: 2, 8, 256>}]} {
    %c0 = arith.constant 0 : index
    %c0_0 = arith.constant 0 : index
    %c0_1 = arith.constant 0 : index
    %0 = vector.load %arg1[%c0, %c0_0, %c0_1] : memref<2x8x256xf32, #tpu.memory_space<vmem>>, vector<2x8x256xf32>
    %cst = arith.constant dense<0.000000e+00> : vector<2x8xf32>
    %1 = vector.multi_reduction <add>, %0, %cst [2] : vector<2x8x256xf32> to vector<2x8xf32>
    %cst_2 = arith.constant 3.906250e-03 : f32
    %2 = vector.broadcast %cst_2 : f32 to vector<2x8xf32>
    %3 = arith.mulf %1, %2 : vector<2x8xf32>
    %c0_3 = arith.constant 0 : index
    %c0_4 = arith.constant 0 : index
    %4 = vector.load %arg2[%c0_3, %c0_4] : memref<8x2xf32, #tpu.memory_space<vmem>>, vector<8x2xf32>
    %cst_5 = arith.constant dense<0.000000e+00> : vector<2x2xf32>
    %5 = tpu.matmul %3, %4, %cst_5 {dimension_numbers = #tpu.dot_dimension_numbers<[1], [0], [0], [1], [0, 0, 1, 1], [], []>} : vector<2x8xf32>, vector<8x2xf32>, vector<2x2xf32> -> vector<2x2xf32>
    %cst_6 = arith.constant 0.000000e+00 : f32
    %6 = vector.broadcast %cst_6 : f32 to vector<2x2xf32>
    %7 = arith.maximumf %5, %6 : vector<2x2xf32>
    %c0_7 = arith.constant 0 : index
    %c0_8 = arith.constant 0 : index
    %8 = vector.load %arg3[%c0_7, %c0_8] : memref<2x8xf32, #tpu.memory_space<vmem>>, vector<2x8xf32>
    %cst_9 = arith.constant dense<0.000000e+00> : vector<2x8xf32>
    %9 = tpu.matmul %7, %8, %cst_9 {dimension_numbers = #tpu.dot_dimension_numbers<[1], [0], [0], [1], [0, 0, 1, 1], [], []>} : vector<2x2xf32>, vector<2x8xf32>, vector<2x8xf32> -> vector<2x8xf32>
    %10 = arith.negf %9 : vector<2x8xf32>
    %11 = math.exp %10 : vector<2x8xf32>
    %cst_10 = arith.constant 1.000000e+00 : f32
    %12 = vector.broadcast %cst_10 : f32 to vector<2x8xf32>
    %13 = arith.addf %12, %11 : vector<2x8xf32>
    %14 = arith.divf %12, %13 : vector<2x8xf32>
    %c0_11 = arith.constant 0 : index
    %c0_12 = arith.constant 0 : index
    %c0_13 = arith.constant 0 : index
    %15 = vector.load %arg1[%c0_11, %c0_12, %c0_13] : memref<2x8x256xf32, #tpu.memory_space<vmem>>, vector<2x8x256xf32>
    %16 = vector.shape_cast %14 : vector<2x8xf32> to vector<2x8x1xf32>
    %17 = vector.broadcast %16 : vector<2x8x1xf32> to vector<2x8x256xf32>
    %18 = arith.mulf %15, %17 : vector<2x8x256xf32>
    %c0_14 = arith.constant 0 : index
    %c0_15 = arith.constant 0 : index
    %c0_16 = arith.constant 0 : index
    %19 = vector.load %arg4[%c0_14, %c0_15, %c0_16] : memref<2x8x256xf32, #tpu.memory_space<vmem>>, vector<2x8x256xf32>
    tpu.vector_store %arg4[%c0_14, %c0_15, %c0_16], %18 {strides = array<i32>} : memref<2x8x256xf32, #tpu.memory_space<vmem>>, vector<2x8x256xf32>,
    return
  }
  func.func @transform_0(%arg0: i32) -> (i32, i32, i32) {
    %c0_i32 = arith.constant 0 : i32
    %c0_i32_0 = arith.constant 0 : i32
    %c0_i32_1 = arith.constant 0 : i32
    return %arg0, %c0_i32, %c0_i32_0 : i32, i32, i32
  }
  func.func @transform_1(%arg0: i32) -> (i32, i32) {
    %c0_i32 = arith.constant 0 : i32
    %c0_i32_0 = arith.constant 0 : i32
    %c0_i32_1 = arith.constant 0 : i32
    return %c0_i32, %c0_i32_0 : i32, i32
  }
  func.func @transform_2(%arg0: i32) -> (i32, i32) {
    %c0_i32 = arith.constant 0 : i32
    %c0_i32_0 = arith.constant 0 : i32
    %c0_i32_1 = arith.constant 0 : i32
    return %c0_i32, %c0_i32_0 : i32, i32
  }
  func.func @transform_3(%arg0: i32) -> (i32, i32, i32) {
    %c0_i32 = arith.constant 0 : i32
    %c0_i32_0 = arith.constant 0 : i32
    %c0_i32_1 = arith.constant 0 : i32
    return %arg0, %c0_i32, %c0_i32_0 : i32, i32, i32
  }
}

</mosaic_0001>

<llo_original>
// kernel: tpu_custom_call.1
$region0: #{tpu_custom_call.1}
  #allocation0 [shape = 'u32[]', space=smem, size = 0x4, offset = 0x4, fixed_abs, tag = 'smem constant byte address 0x4 - core index']
  #allocation1 [shape = 'u32[72,128]{1,0:T(1,128)}', space=vmem, size = 0x9000, scoped, tag = 'internal scratch']
  %s0 = inlined_call_operand.hbm [shape: f32[2,8,256], index: 0, kind: input, shape index: {}]
  %s1 = inlined_call_operand.vmem [shape: f32[8,2], index: 1, kind: input, shape index: {}]
  %s2 = inlined_call_operand.vmem [shape: f32[2,8], index: 2, kind: input, shape index: {}]
  %s3 = inlined_call_operand.hbm [shape: f32[2,8,256], index: 3, kind: output, shape index: {}]
  %s4 = sld [smem:[#allocation0]]
  $region26: #{tpu_custom_call.1} parent=0
    _
  %s6 = ssub.s32 1, %s4
  %s7 = scalar_select 0, %s6, %s4
  $region1: #{tpu_custom_call.1} parent=0
    #allocation2 [shape = 'u8[16384]{0}', space=vmem, size = 0x4000, scoped, tag = 'input window, operand 0, single buffered']
    #allocation3 [shape = 's32[1]{0}', space=sflag, size = 0x4, scoped, tag = 'scoped memory for tpu_custom_call.1']
    #allocation4 [shape = 's32[1]{0}', space=sflag, size = 0x4, scoped, tag = 'scoped memory for tpu_custom_call.1']
    #allocation5 [shape = 'u8[16384]{0}', space=vmem, size = 0x4000, scoped, tag = 'output window, operand 0, single buffered']
    %8 = vsyncpa [#allocation3], 0
    %9 = vsyncpa [#allocation4], 0
    // Predicated region
    $region2: #{tpu_custom_call.1} parent=1 // pred_check
      _
    $region3: #{tpu_custom_call.1} parent=1 // pred_check_branch
      %11 = sbr.rel (0) target = $region5
    $region4: #{tpu_custom_call.1} parent=1 // pred_region
      %13 = vsyncadd [#allocation3], 0
      %s14 = sshll.u32 %s0, 4
      %s15 = int_to_ptr.hbm [resolvable:$true] %s14
      %s16 = sshll.u32 [#allocation2], 4
      %s17 = int_to_ptr.vmem [resolvable:$true] %s16
      %22 = dma.hbm_to_vmem [thread:$0]  %s15, 512, %s17, [#allocation3], 256, 256, 16
    $region5: #{tpu_custom_call.1} parent=1 // pred_fallthru
      _
    // Predicated region
    $region6: #{tpu_custom_call.1} parent=1 // pred_check
      _
    $region7: #{tpu_custom_call.1} parent=1 // pred_check_branch
      %24 = sbr.rel (0) target = $region9
    $region8: #{tpu_custom_call.1} parent=1 // pred_region
      _
    $region9: #{tpu_custom_call.1} parent=1 // pred_fallthru
      _
    // Predicated region
    $region10: #{tpu_custom_call.1} parent=1 // pred_check
      _
    $region11: #{tpu_custom_call.1} parent=1 // pred_check_branch
      %26 = sbr.rel (0) target = $region13
    $region12: #{tpu_custom_call.1} parent=1 // pred_region
      _
    $region13: #{tpu_custom_call.1} parent=1 // pred_fallthru
      _
    // Predicated region
    $region14: #{tpu_custom_call.1} parent=1 // pred_check
      _
    $region15: #{tpu_custom_call.1} parent=1 // pred_check_branch
      %28 = sbr.rel (0) target = $region17
    $region16: #{tpu_custom_call.1} parent=1 // pred_region
      %30 = dma.done [#allocation3], 512
    $region17: #{tpu_custom_call.1} parent=1 // pred_fallthru
      _
    %v31 = vld [vmem:[#allocation2] sm:$0xff]
    %v32 = vld [vmem:[#allocation2 + $0x8] sm:$0xff]
    %v33 = vld [vmem:[#allocation2 + $0x10] sm:$0xff]
    %v34 = vld [vmem:[#allocation2 + $0x18] sm:$0xff]
    %v35 = vadd.f32 %v31, %v32
    %36 = vadd.xlane.f32.xlu0 %v35
    %v37 = vpop.xlane.xlu0 %36
    %v38 = vadd.f32 %v33, %v34
    %39 = vadd.xlane.f32.xlu0 %v38
    %v40 = vpop.xlane.xlu0 %39
    %v41 = vmul.f32 %v37, 0.00390625
    %v42 = vmul.f32 %v40, 0.00390625
    %v43 = vld [vmem:[%s1] sm:$0xff]
    %v46 = vlaneseq
    %v47 = vand.u32 %v46, 127
    %v48 = vperm.slane %v41, %v47
    %v49 = vperm.slane %v42, %v47
    %vm50 = vcmask 1041409
    %v51 = vsel %vm50, %v49, %v48
    %vm52 = vcmask 64512
    %v53 = vsel %vm52, %v51, 0
    %55 = vmatpush.msra.mxu0 0.0
    %56 = vmatpush.msra.mxu0 0.0
    %57 = vmatpush.msra.mxu0 0.0
    %58 = vmatpush.msra.mxu0 0.0
    %59 = vmatpush.msra.mxu0 0.0
    %60 = vmatpush.msra.mxu0 0.0
    %61 = vmatpush.msra.mxu0 0.0
    %62 = vmatpush.msra.mxu0 0.0
    %63 = vmatpush.msra.mxu0 0.0
    %64 = vmatpush.msra.mxu0 0.0
    %65 = vmatpush.msra.mxu0 0.0
    %66 = vmatpush.msra.mxu0 0.0
    %67 = vmatpush.msra.mxu0 0.0
    %68 = vmatpush.msra.mxu0 0.0
    %69 = vmatpush.msra.mxu0 0.0
    %70 = vmatpush.msra.mxu0 %v43
    %71 = vmatmul.f32.gmra.mxu0 %v53
    %v72 = vpop.f32.mrf.mxu0
    %v73 = vadd.f32 0.0, %v72
    %74 = vdwg.mxu0
    %v75 = vmax.f32 %v73, 0.0
    %v76 = vld [vmem:[%s2] sm:$0x3]
    %vm77 = vcmask 15360
    %v79 = vsel %vm77, %v75, 0
    %vm81 = vcmask 1041408
    %v83 = vsel %vm81, %v76, 0
    %85 = vmatpush.msra.mxu0 0.0
    %86 = vmatpush.msra.mxu0 0.0
    %87 = vmatpush.msra.mxu0 0.0
    %88 = vmatpush.msra.mxu0 0.0
    %89 = vmatpush.msra.mxu0 0.0
    %90 = vmatpush.msra.mxu0 0.0
    %91 = vmatpush.msra.mxu0 0.0
    %92 = vmatpush.msra.mxu0 0.0
    %93 = vmatpush.msra.mxu0 0.0
    %94 = vmatpush.msra.mxu0 0.0
    %95 = vmatpush.msra.mxu0 0.0
    %96 = vmatpush.msra.mxu0 0.0
    %97 = vmatpush.msra.mxu0 0.0
    %98 = vmatpush.msra.mxu0 0.0
    %99 = vmatpush.msra.mxu0 0.0
    %100 = vmatpush.msra.mxu0 %v83
    %101 = vmatmul.f32.gmra.mxu0 %v79
    %v102 = vpop.f32.mrf.mxu0
    %v103 = vadd.f32 0.0, %v102
    %104 = vdwg.mxu0
    %v105 = vxor.u32 %v103, 2147483648
    %v106 = vmul.f32 %v105, 1.442695
    %v107 = vpow.pop %v106
    %v108 = vadd.f32 %v107, 1.0
    %v109 = vrcp.pop %v108
    %v110 = vmul.f32 %v108, %v109
    %v111 = vsub.f32 1.0, %v110
    %v112 = vmul.f32 %v109, %v111
    %v113 = vadd.f32 %v109, %v112
    %vm114 = vweird.f32 %v108
    %vm115 = vweird.f32 %v109
    %vm116 = vmor %vm114, %vm115
    %v117 = vsel %vm116, %v109, %v113
    %v118 = vand.u32 2147483647, %v108
    %vm119 = vcmp.eq.f32.partialorder %v118, 8.507059e+37
    %v120 = vand.u32 %v108, 2147483648
    %v121 = vor.u32 1.1754944e-38, %v120
    %v122 = vsel %vm119, %v121, %v117
    %v123 = vmul.f32 1.0, %v122
    %v124 = vperm.slane %v123, 0
    %v125 = vlaneseq
    %v126 = vshrl.u32 %v125, 7
    %128 = vset.pattern.permute.xlu0 %v126
    %129 = vperm.xlu0 %128, %v124
    %v130 = vpop.permute.xlu0 %129
    %v131 = vperm.slane %v123, 1
    %v132 = vlaneseq
    %v133 = vshrl.u32 %v132, 7
    %135 = vset.pattern.permute.xlu0 %v133
    %136 = vperm.xlu0 %135, %v131
    %v137 = vpop.permute.xlu0 %136
    %v138 = vmul.f32 %v31, %v130
    %v139 = vmul.f32 %v32, %v130
    %v140 = vmul.f32 %v33, %v137
    %v141 = vmul.f32 %v34, %v137
    %142 = vst [vmem:[#allocation5] sm:$0xff] %v138
    %143 = vst [vmem:[#allocation5 + $0x8] sm:$0xff] %v139
    %144 = vst [vmem:[#allocation5 + $0x10] sm:$0xff] %v140
    %145 = vst [vmem:[#allocation5 + $0x18] sm:$0xff] %v141
    // Predicated region
    $region18: #{tpu_custom_call.1} parent=1 // pred_check
      _
    $region19: #{tpu_custom_call.1} parent=1 // pred_check_branch
      %147 = sbr.rel (0) target = $region21
    $region20: #{tpu_custom_call.1} parent=1 // pred_region
      %149 = vsyncadd [#allocation4], 0
      %s150 = sshll.u32 [#allocation5], 4
      %s151 = int_to_ptr.vmem [resolvable:$true] %s150
      %s152 = sshll.u32 %s3, 4
      %s153 = int_to_ptr.hbm [resolvable:$true] %s152
      %158 = dma.vmem_to_hbm [thread:$0]  %s151, 512, %s153, [#allocation4], 256, 256, 16
    $region21: #{tpu_custom_call.1} parent=1 // pred_fallthru
      _
    // Predicated region
    $region22: #{tpu_custom_call.1} parent=1 // pred_check
      _
    $region23: #{tpu_custom_call.1} parent=1 // pred_check_branch
      %160 = sbr.rel (0) target = $region25
    $region24: #{tpu_custom_call.1} parent=1 // pred_region
      %162 = dma.done [#allocation4], 512
    $region25: #{tpu_custom_call.1} parent=1 // pred_fallthru
      _
    %163 = vsyncpa [#allocation3], 1
    %164 = vsyncpa [#allocation4], 1

</llo_original>
